<compile_context>
chip_gen: v5e
topology: v5e:2x2
jax: 0.10.0
libtpu: 0.0.40
codegen_flags: <defaults>
</compile_context>

<pallas_src>
import functools

import jax
import jax.numpy as jnp
from jax.experimental import pallas as pl
from jax.experimental.pallas import tpu as pltpu


def _round_up(x, m):
    return (x + m - 1) // m * m


# ----------------------------------------------------------------------------
# Pallas kernel: one SRU layer, grid over time blocks, recurrence in VMEM
# ----------------------------------------------------------------------------
def _sru_layer_kernel(x_ref, w_ref, b_ref, c0_ref, h_ref, clast_ref,
                      c_state, u_scratch, *, k, dp, b_p, t_blk, seq_len):
    blk = pl.program_id(0)

    @pl.when(blk == 0)
    def _():
        c_state[...] = c0_ref[...]

    # One large bf16 MXU matmul for the whole time block:
    #   (t_blk*b_p, n_in_p) @ (n_in_p, k*dp) -> f32 accumulation in VMEM.
    u_scratch[...] = jnp.dot(x_ref[...], w_ref[...],
                             preferred_element_type=jnp.float32)

    # Hoisted bias broadcasts (once per block, not per timestep).
    b1 = jnp.broadcast_to(b_ref[0:1, :], (b_p, dp))
    b2 = jnp.broadcast_to(b_ref[1:2, :], (b_p, dp))

    need_time_mask = (seq_len % t_blk) != 0

    def step(tt, c_prev):
        row = pl.multiple_of(tt * b_p, b_p)          # b_p is a multiple of 8
        u = u_scratch[pl.ds(row, b_p), :]            # (b_p, k*dp), f32
        u0 = u[:, 0 * dp:1 * dp]
        u1 = u[:, 1 * dp:2 * dp]
        u2 = u[:, 2 * dp:3 * dp]
        g1 = jax.nn.sigmoid(u1 + b1)
        g2 = jax.nn.sigmoid(u2 + b2)
        c_new = (c_prev - u0) * g1 + u0
        if need_time_mask:
            # freeze the cell state on padded timesteps
            c_new = jnp.where(blk * t_blk + tt < seq_len, c_new, c_prev)
        if k == 4:
            xp = u[:, 3 * dp:4 * dp]
        else:  # k == 3: highway connection uses the raw layer input (n_in_p == dp)
            xp = x_ref[pl.ds(row, b_p), :].astype(jnp.float32)
        h = (jnp.tanh(c_new) - xp) * g2 + xp         # activation_type = 1 (tanh)
        h_ref[pl.ds(row, b_p), :] = h
        return c_new

    c_final = jax.lax.fori_loop(0, t_blk, step, c_state[...],
                                unroll=min(t_blk, 8))
    c_state[...] = c_final

    @pl.when(blk == pl.num_programs(0) - 1)
    def _():
        clast_ref[...] = c_final


def _choose_time_block(seq_len, b_p, k, dp):
    rows_target = 256                       # fill the MXU M dimension
    t = max(1, (rows_target + b_p - 1) // b_p)
    t = min(t, 64)                          # bound unroll length / scratch
    t = min(t, max(1, seq_len))
    max_rows = (8 << 20) // (k * dp * 4)    # keep the f32 u scratch < ~8 MiB
    t = max(1, min(t, max(1, max_rows // b_p)))
    return t


def sru_layer_pallas(x, p, c0=None):
    """One SRUCell forward. x: (L, B, n_in) f32. Returns h (L, B, d), c_last (B, d)."""
    L, B, n_in = x.shape
    k, d, dp, n_in_p = p["k"], p["d"], p["dp"], p["n_in_p"]
    assert n_in == p["n_in"]

    b_p = _round_up(B, 8)
    t_blk = _choose_time_block(L, b_p, k, dp)
    l_p = _round_up(L, t_blk)
    rows = t_blk * b_p
    num_blocks = l_p // t_blk

    # bf16 matmul input, padded to lane/sublane-dense shapes, flattened so the
    # kernel sees a clean 2D (rows, n_in_p) block per time block.
    x_mm = jnp.pad(x.astype(jnp.bfloat16),
                   ((0, l_p - L), (0, b_p - B), (0, n_in_p - n_in)))
    x2d = x_mm.reshape(l_p * b_p, n_in_p)

    if c0 is None:
        c0_p = jnp.zeros((b_p, dp), jnp.float32)
    else:
        c0_p = jnp.zeros((b_p, dp), jnp.float32).at[:B, :d].set(
            c0.astype(jnp.float32))

    # Explicit VMEM budget: resident W + double-buffered x/h blocks + scratch.
    vmem_bytes = (2 * rows * n_in_p * 2          # x blocks (bf16, double buffer)
                  + 2 * rows * dp * 4            # h blocks (f32, double buffer)
                  + 2 * n_in_p * k * dp * 2      # resident W (bf16)
                  + rows * k * dp * 4            # u scratch
                  + 3 * b_p * dp * 4 + 4 * dp * 4)
    vmem_limit = int(min(max(1.5 * vmem_bytes + (4 << 20), 32 << 20), 64 << 20))

    kernel = functools.partial(_sru_layer_kernel, k=k, dp=dp, b_p=b_p,
                               t_blk=t_blk, seq_len=L)

    h2d, c_last_p = pl.pallas_call(
        kernel,
        out_shape=(
            jax.ShapeDtypeStruct((l_p * b_p, dp), jnp.float32),
            jax.ShapeDtypeStruct((b_p, dp), jnp.float32),
        ),
        grid_spec=pltpu.PrefetchScalarGridSpec(
            num_scalar_prefetch=0,
            grid=(num_blocks,),
            in_specs=[
                pl.BlockSpec((rows, n_in_p), lambda t: (t, 0)),      # x block
                pl.BlockSpec((n_in_p, k * dp), lambda t: (0, 0)),    # W (resident)
                pl.BlockSpec((2, dp), lambda t: (0, 0)),             # bias
                pl.BlockSpec((b_p, dp), lambda t: (0, 0)),           # c0
            ],
            out_specs=(
                pl.BlockSpec((rows, dp), lambda t: (t, 0)),          # h block
                pl.BlockSpec((b_p, dp), lambda t: (0, 0)),           # c_last
            ),
            scratch_shapes=[
                pltpu.VMEM((b_p, dp), jnp.float32),                  # carried cell state
                pltpu.VMEM((rows, k * dp), jnp.float32),             # u for the block
            ],
        ),
        compiler_params=pltpu.CompilerParams(
            dimension_semantics=("arbitrary",),
            vmem_limit_bytes=vmem_limit),
    )(x2d, p["w"], p["b"], c0_p)

    h = h2d.reshape(l_p, b_p, dp)[:L, :B, :d].astype(x.dtype)
    c_last = c_last_p[:B, :d].astype(x.dtype)
    return h, c_last


# ----------------------------------------------------------------------------
# Parameter setup (raw PyTorch layout) + one-time kernel-layout preparation
# ----------------------------------------------------------------------------
def init_sru_params(key, input_size, hidden_size, num_layers):
    """Matches SRUCell.init_weight: weight ~ U(-sqrt(3/n_in), sqrt(3/n_in)), bias = 0."""
    params = []
    for i in range(num_layers):
        layer_in = input_size if i == 0 else hidden_size
        k = 4 if layer_in != hidden_size else 3
        val_range = (3.0 / layer_in) ** 0.5
        key, wk = jax.random.split(key)
        w = jax.random.uniform(wk, (layer_in, hidden_size * k), jnp.float32,
                               minval=-val_range, maxval=val_range)
        b = jnp.zeros((hidden_size * 2,), jnp.float32)
        params.append({"weight": w, "bias": b, "k": k})
    return params


def prepare_sru_params(raw_params, hidden_size, lane=128):
    """One-time: PyTorch interleaved columns -> gate-blocked, 128-lane padded, bf16."""
    d = hidden_size
    prepared = []
    for p in raw_params:
        w, b, k = p["weight"], p["bias"], p["k"]
        n_in = w.shape[0]
        dp = _round_up(d, lane)
        n_in_p = _round_up(n_in, lane)
        w_g = w.reshape(n_in, d, k).transpose(0, 2, 1)        # (n_in, k, d) gate-blocked
        w_p = jnp.zeros((n_in_p, k, dp), jnp.float32).at[:n_in, :, :d].set(w_g)
        w_p = w_p.reshape(n_in_p, k * dp).astype(jnp.bfloat16)
        b_p = jnp.zeros((2, dp), jnp.float32).at[:, :d].set(b.reshape(2, d))
        prepared.append(dict(w=w_p, b=b_p, k=k, d=d, dp=dp,
                             n_in=n_in, n_in_p=n_in_p))
    return prepared


def sru_forward(x, prepared_params, hidden_size, c0=None):
    """SRU.forward (unidirectional, eval mode). x: (L, B, input_size).
    Returns (h_top (L, B, d), fh (depth, B, d))."""
    depth = len(prepared_params)
    if c0 is None:
        c0 = [None] * depth
    prevx = x
    lstc = []
    for i, p in enumerate(prepared_params):
        h, c = sru_layer_pallas(prevx, p, c0[i])
        prevx = h
        lstc.append(c)
    fh = jnp.stack(lstc)  # (depth, B, d)
    return prevx, fh


# ----------------------------------------------------------------------------
# Pure-JAX reference mirroring the kernel's precision choice (bf16 matmul,
# f32 recurrence), using the original interleaved-u indexing of the CUDA kernel
# ----------------------------------------------------------------------------
def sru_reference(x, raw_params, hidden_size):
    d = hidden_size
    prevx = x
    lstc = []
    for p in raw_params:
        w, b, k = p["weight"], p["bias"], p["k"]
        L, B, n_in = prevx.shape
        x_mm = prevx.astype(jnp.bfloat16)
        u = jnp.einsum("lbi,io->lbo", x_mm, w.astype(jnp.bfloat16),
                       preferred_element_type=jnp.float32).reshape(L, B, d, k)
        b1, b2 = b[:d], b[d:]

        def step(c, inp):
            u_t, x_t = inp
            g1 = jax.nn.sigmoid(u_t[:, :, 1] + b1)
            g2 = jax.nn.sigmoid(u_t[:, :, 2] + b2)
            c_new = (c - u_t[:, :, 0]) * g1 + u_t[:, :, 0]
            xp = u_t[:, :, 3] if k == 4 else x_t.astype(jnp.float32)
            h = (jnp.tanh(c_new) - xp) * g2 + xp
            return c_new, h

        c0 = jnp.zeros((B, d), jnp.float32)
        c_last, h = jax.lax.scan(step, c0, (u, x_mm))
        prevx = h
        lstc.append(c_last)
    return prevx, jnp.stack(lstc)


if __name__ == "__main__":
    # Small shapes consistent with the module's forward: (seq_len, batch, input_size)
    L, B = 8, 2
    input_size, hidden_size, num_layers = 16, 32, 2

    key = jax.random.PRNGKey(0)
    key, xk, pk = jax.random.split(key, 3)
    x = jax.random.normal(xk, (L, B, input_size), jnp.float32)

    raw_params = init_sru_params(pk, input_size, hidden_size, num_layers)
    dev_params = prepare_sru_params(raw_params, hidden_size)   # layout prep done ONCE

    h_top, fh = sru_forward(x, dev_params, hidden_size)
    h_top = jax.block_until_ready(h_top)
    fh = jax.block_until_ready(fh)

    assert h_top.shape == (L, B, hidden_size)
    assert fh.shape == (num_layers, B, hidden_size)

    # Verify against a pure-JAX reference of the SRU recurrence that mirrors the
    # kernel's bf16-matmul / f32-recurrence precision choice.
    h_ref, fh_ref = sru_reference(x, raw_params, hidden_size)
    import numpy as np
    np.testing.assert_allclose(np.asarray(h_top), np.asarray(h_ref),
                               rtol=1e-3, atol=1e-3)
    np.testing.assert_allclose(np.asarray(fh), np.asarray(fh_ref),
                               rtol=1e-3, atol=1e-3)

    print("KERNEL_OK")
</pallas_src>

<mosaic_0001>
module attributes {stable_mosaic.version = 11 : i64} {
  func.func @_sru_layer_kernel(%arg0: i32, %arg1: memref<64x128xbf16, #tpu.memory_space<vmem>>, %arg2: memref<128x512xbf16, #tpu.memory_space<vmem>>, %arg3: memref<2x128xf32, #tpu.memory_space<vmem>>, %arg4: memref<8x128xf32, #tpu.memory_space<vmem>>, %arg5: memref<64x128xf32, #tpu.memory_space<vmem>>, %arg6: memref<8x128xf32, #tpu.memory_space<vmem>>, %arg7: memref<8x128xf32, #tpu.memory_space<vmem>>, %arg8: memref<64x512xf32, #tpu.memory_space<vmem>>) attributes {dimension_semantics = [#tpu.dimension_semantics<arbitrary>], iteration_bounds = array<i64: 1>, scalar_prefetch = 0 : i64, scratch_operands = 2 : i64, tpu.core_type = #tpu.core_type<tc>, window_params = [{transform_indices = @transform_0, window_bounds = array<i64: 64, 128>}, {pipeline_mode = #tpu.pipeline_mode<synchronous>, transform_indices = @transform_1, window_bounds = array<i64: 128, 512>}, {pipeline_mode = #tpu.pipeline_mode<synchronous>, transform_indices = @transform_2, window_bounds = array<i64: 2, 128>}, {pipeline_mode = #tpu.pipeline_mode<synchronous>, transform_indices = @transform_3, window_bounds = array<i64: 8, 128>}, {transform_indices = @transform_4, window_bounds = array<i64: 64, 128>}, {pipeline_mode = #tpu.pipeline_mode<synchronous>, transform_indices = @transform_5, window_bounds = array<i64: 8, 128>}]} {
    %c0_i32 = arith.constant 0 : i32
    %0 = arith.cmpi eq, %arg0, %c0_i32 : i32
    %1 = arith.extui %0 : i1 to i32
    %c0_i32_0 = arith.constant 0 : i32
    %2 = arith.cmpi ne, %1, %c0_i32_0 : i32
    scf.if %2 {
      %c0_56 = arith.constant 0 : index
      %c0_57 = arith.constant 0 : index
      %250 = vector.load %arg4[%c0_56, %c0_57] : memref<8x128xf32, #tpu.memory_space<vmem>>, vector<8x128xf32>
      %c0_58 = arith.constant 0 : index
      %c0_59 = arith.constant 0 : index
      %251 = vector.load %arg7[%c0_58, %c0_59] : memref<8x128xf32, #tpu.memory_space<vmem>>, vector<8x128xf32>
      tpu.vector_store %arg7[%c0_58, %c0_59], %250 {strides = array<i32>} : memref<8x128xf32, #tpu.memory_space<vmem>>, vector<8x128xf32>,
    } else {
    }
    %c0 = arith.constant 0 : index
    %c0_1 = arith.constant 0 : index
    %3 = vector.load %arg1[%c0, %c0_1] : memref<64x128xbf16, #tpu.memory_space<vmem>>, vector<64x128xbf16>
    %c0_2 = arith.constant 0 : index
    %c0_3 = arith.constant 0 : index
    %4 = vector.load %arg2[%c0_2, %c0_3] : memref<128x512xbf16, #tpu.memory_space<vmem>>, vector<128x512xbf16>
    %cst = arith.constant dense<0.000000e+00> : vector<64x512xf32>
    %5 = tpu.matmul %3, %4, %cst {dimension_numbers = #tpu.dot_dimension_numbers<[1], [0], [0], [1], [0, 0, 1, 1], [], []>} : vector<64x128xbf16>, vector<128x512xbf16>, vector<64x512xf32> -> vector<64x512xf32>
    %c0_4 = arith.constant 0 : index
    %c0_5 = arith.constant 0 : index
    %6 = vector.load %arg8[%c0_4, %c0_5] : memref<64x512xf32, #tpu.memory_space<vmem>>, vector<64x512xf32>
    tpu.vector_store %arg8[%c0_4, %c0_5], %5 {strides = array<i32>} : memref<64x512xf32, #tpu.memory_space<vmem>>, vector<64x512xf32>,
    %c0_6 = arith.constant 0 : index
    %c0_7 = arith.constant 0 : index
    %7 = vector.load %arg3[%c0_6, %c0_7] : memref<2x128xf32, #tpu.memory_space<vmem>>, vector<1x128xf32>
    %8 = vector.shape_cast %7 : vector<1x128xf32> to vector<1x128xf32>
    %9 = vector.broadcast %8 : vector<1x128xf32> to vector<8x128xf32>
    %c1 = arith.constant 1 : index
    %c0_8 = arith.constant 0 : index
    %10 = vector.load %arg3[%c1, %c0_8] : memref<2x128xf32, #tpu.memory_space<vmem>>, vector<1x128xf32>
    %11 = vector.shape_cast %10 : vector<1x128xf32> to vector<1x128xf32>
    %12 = vector.broadcast %11 : vector<1x128xf32> to vector<8x128xf32>
    %c0_9 = arith.constant 0 : index
    %c0_10 = arith.constant 0 : index
    %13 = vector.load %arg7[%c0_9, %c0_10] : memref<8x128xf32, #tpu.memory_space<vmem>>, vector<8x128xf32>
    %c0_i32_11 = arith.constant 0 : i32
    %c8_i32 = arith.constant 8 : i32
    %14 = arith.muli %c0_i32_11, %c8_i32 : i32
    %15 = tpu.assume_multiple %14, 8 : i32
    %16 = arith.index_cast %15 : i32 to index
    %c0_12 = arith.constant 0 : index
    %17 = vector.load %arg8[%16, %c0_12] : memref<64x512xf32, #tpu.memory_space<vmem>>, vector<8x512xf32>
    %18 = vector.extract_strided_slice %17 {offsets = [0, 0], sizes = [8, 128], strides = [1, 1]} : vector<8x512xf32> to vector<8x128xf32>
    %19 = vector.extract_strided_slice %17 {offsets = [0, 128], sizes = [8, 128], strides = [1, 1]} : vector<8x512xf32> to vector<8x128xf32>
    %20 = vector.extract_strided_slice %17 {offsets = [0, 256], sizes = [8, 128], strides = [1, 1]} : vector<8x512xf32> to vector<8x128xf32>
    %21 = arith.addf %19, %9 : vector<8x128xf32>
    %22 = arith.negf %21 : vector<8x128xf32>
    %23 = math.exp %22 : vector<8x128xf32>
    %cst_13 = arith.constant 1.000000e+00 : f32
    %24 = vector.broadcast %cst_13 : f32 to vector<8x128xf32>
    %25 = arith.addf %24, %23 : vector<8x128xf32>
    %26 = arith.divf %24, %25 : vector<8x128xf32>
    %27 = arith.addf %20, %12 : vector<8x128xf32>
    %28 = arith.negf %27 : vector<8x128xf32>
    %29 = math.exp %28 : vector<8x128xf32>
    %cst_14 = arith.constant 1.000000e+00 : f32
    %30 = vector.broadcast %cst_14 : f32 to vector<8x128xf32>
    %31 = arith.addf %30, %29 : vector<8x128xf32>
    %32 = arith.divf %30, %31 : vector<8x128xf32>
    %33 = arith.subf %13, %18 : vector<8x128xf32>
    %34 = arith.mulf %33, %26 : vector<8x128xf32>
    %35 = arith.addf %34, %18 : vector<8x128xf32>
    %36 = vector.extract_strided_slice %17 {offsets = [0, 384], sizes = [8, 128], strides = [1, 1]} : vector<8x512xf32> to vector<8x128xf32>
    %37 = math.tanh %35 : vector<8x128xf32>
    %38 = arith.subf %37, %36 : vector<8x128xf32>
    %39 = arith.mulf %38, %32 : vector<8x128xf32>
    %40 = arith.addf %39, %36 : vector<8x128xf32>
    %41 = arith.index_cast %15 : i32 to index
    %c0_15 = arith.constant 0 : index
    %42 = vector.load %arg5[%41, %c0_15] : memref<64x128xf32, #tpu.memory_space<vmem>>, vector<8x128xf32>
    tpu.vector_store %arg5[%41, %c0_15], %40 {strides = array<i32>} : memref<64x128xf32, #tpu.memory_space<vmem>>, vector<8x128xf32>,
    %c1_i32 = arith.constant 1 : i32
    %c8_i32_16 = arith.constant 8 : i32
    %43 = arith.muli %c1_i32, %c8_i32_16 : i32
    %44 = tpu.assume_multiple %43, 8 : i32
    %45 = arith.index_cast %44 : i32 to index
    %c0_17 = arith.constant 0 : index
    %46 = vector.load %arg8[%45, %c0_17] : memref<64x512xf32, #tpu.memory_space<vmem>>, vector<8x512xf32>
    %47 = vector.extract_strided_slice %46 {offsets = [0, 0], sizes = [8, 128], strides = [1, 1]} : vector<8x512xf32> to vector<8x128xf32>
    %48 = vector.extract_strided_slice %46 {offsets = [0, 128], sizes = [8, 128], strides = [1, 1]} : vector<8x512xf32> to vector<8x128xf32>
    %49 = vector.extract_strided_slice %46 {offsets = [0, 256], sizes = [8, 128], strides = [1, 1]} : vector<8x512xf32> to vector<8x128xf32>
    %50 = arith.addf %48, %9 : vector<8x128xf32>
    %51 = arith.negf %50 : vector<8x128xf32>
    %52 = math.exp %51 : vector<8x128xf32>
    %cst_18 = arith.constant 1.000000e+00 : f32
    %53 = vector.broadcast %cst_18 : f32 to vector<8x128xf32>
    %54 = arith.addf %53, %52 : vector<8x128xf32>
    %55 = arith.divf %53, %54 : vector<8x128xf32>
    %56 = arith.addf %49, %12 : vector<8x128xf32>
    %57 = arith.negf %56 : vector<8x128xf32>
    %58 = math.exp %57 : vector<8x128xf32>
    %cst_19 = arith.constant 1.000000e+00 : f32
    %59 = vector.broadcast %cst_19 : f32 to vector<8x128xf32>
    %60 = arith.addf %59, %58 : vector<8x128xf32>
    %61 = arith.divf %59, %60 : vector<8x128xf32>
    %62 = arith.subf %35, %47 : vector<8x128xf32>
    %63 = arith.mulf %62, %55 : vector<8x128xf32>
    %64 = arith.addf %63, %47 : vector<8x128xf32>
    %65 = vector.extract_strided_slice %46 {offsets = [0, 384], sizes = [8, 128], strides = [1, 1]} : vector<8x512xf32> to vector<8x128xf32>
    %66 = math.tanh %64 : vector<8x128xf32>
    %67 = arith.subf %66, %65 : vector<8x128xf32>
    %68 = arith.mulf %67, %61 : vector<8x128xf32>
    %69 = arith.addf %68, %65 : vector<8x128xf32>
    %70 = arith.index_cast %44 : i32 to index
    %c0_20 = arith.constant 0 : index
    %71 = vector.load %arg5[%70, %c0_20] : memref<64x128xf32, #tpu.memory_space<vmem>>, vector<8x128xf32>
    tpu.vector_store %arg5[%70, %c0_20], %69 {strides = array<i32>} : memref<64x128xf32, #tpu.memory_space<vmem>>, vector<8x128xf32>,
    %c2_i32 = arith.constant 2 : i32
    %c8_i32_21 = arith.constant 8 : i32
    %72 = arith.muli %c2_i32, %c8_i32_21 : i32
    %73 = tpu.assume_multiple %72, 8 : i32
    %74 = arith.index_cast %73 : i32 to index
    %c0_22 = arith.constant 0 : index
    %75 = vector.load %arg8[%74, %c0_22] : memref<64x512xf32, #tpu.memory_space<vmem>>, vector<8x512xf32>
    %76 = vector.extract_strided_slice %75 {offsets = [0, 0], sizes = [8, 128], strides = [1, 1]} : vector<8x512xf32> to vector<8x128xf32>
    %77 = vector.extract_strided_slice %75 {offsets = [0, 128], sizes = [8, 128], strides = [1, 1]} : vector<8x512xf32> to vector<8x128xf32>
    %78 = vector.extract_strided_slice %75 {offsets = [0, 256], sizes = [8, 128], strides = [1, 1]} : vector<8x512xf32> to vector<8x128xf32>
    %79 = arith.addf %77, %9 : vector<8x128xf32>
    %80 = arith.negf %79 : vector<8x128xf32>
    %81 = math.exp %80 : vector<8x128xf32>
    %cst_23 = arith.constant 1.000000e+00 : f32
    %82 = vector.broadcast %cst_23 : f32 to vector<8x128xf32>
    %83 = arith.addf %82, %81 : vector<8x128xf32>
    %84 = arith.divf %82, %83 : vector<8x128xf32>
    %85 = arith.addf %78, %12 : vector<8x128xf32>
    %86 = arith.negf %85 : vector<8x128xf32>
    %87 = math.exp %86 : vector<8x128xf32>
    %cst_24 = arith.constant 1.000000e+00 : f32
    %88 = vector.broadcast %cst_24 : f32 to vector<8x128xf32>
    %89 = arith.addf %88, %87 : vector<8x128xf32>
    %90 = arith.divf %88, %89 : vector<8x128xf32>
    %91 = arith.subf %64, %76 : vector<8x128xf32>
    %92 = arith.mulf %91, %84 : vector<8x128xf32>
    %93 = arith.addf %92, %76 : vector<8x128xf32>
    %94 = vector.extract_strided_slice %75 {offsets = [0, 384], sizes = [8, 128], strides = [1, 1]} : vector<8x512xf32> to vector<8x128xf32>
    %95 = math.tanh %93 : vector<8x128xf32>
    %96 = arith.subf %95, %94 : vector<8x128xf32>
    %97 = arith.mulf %96, %90 : vector<8x128xf32>
    %98 = arith.addf %97, %94 : vector<8x128xf32>
    %99 = arith.index_cast %73 : i32 to index
    %c0_25 = arith.constant 0 : index
    %100 = vector.load %arg5[%99, %c0_25] : memref<64x128xf32, #tpu.memory_space<vmem>>, vector<8x128xf32>
    tpu.vector_store %arg5[%99, %c0_25], %98 {strides = array<i32>} : memref<64x128xf32, #tpu.memory_space<vmem>>, vector<8x128xf32>,
    %c3_i32 = arith.constant 3 : i32
    %c8_i32_26 = arith.constant 8 : i32
    %101 = arith.muli %c3_i32, %c8_i32_26 : i32
    %102 = tpu.assume_multiple %101, 8 : i32
    %103 = arith.index_cast %102 : i32 to index
    %c0_27 = arith.constant 0 : index
    %104 = vector.load %arg8[%103, %c0_27] : memref<64x512xf32, #tpu.memory_space<vmem>>, vector<8x512xf32>
    %105 = vector.extract_strided_slice %104 {offsets = [0, 0], sizes = [8, 128], strides = [1, 1]} : vector<8x512xf32> to vector<8x128xf32>
    %106 = vector.extract_strided_slice %104 {offsets = [0, 128], sizes = [8, 128], strides = [1, 1]} : vector<8x512xf32> to vector<8x128xf32>
    %107 = vector.extract_strided_slice %104 {offsets = [0, 256], sizes = [8, 128], strides = [1, 1]} : vector<8x512xf32> to vector<8x128xf32>
    %108 = arith.addf %106, %9 : vector<8x128xf32>
    %109 = arith.negf %108 : vector<8x128xf32>
    %110 = math.exp %109 : vector<8x128xf32>
    %cst_28 = arith.constant 1.000000e+00 : f32
    %111 = vector.broadcast %cst_28 : f32 to vector<8x128xf32>
    %112 = arith.addf %111, %110 : vector<8x128xf32>
    %113 = arith.divf %111, %112 : vector<8x128xf32>
    %114 = arith.addf %107, %12 : vector<8x128xf32>
    %115 = arith.negf %114 : vector<8x128xf32>
    %116 = math.exp %115 : vector<8x128xf32>
    %cst_29 = arith.constant 1.000000e+00 : f32
    %117 = vector.broadcast %cst_29 : f32 to vector<8x128xf32>
    %118 = arith.addf %117, %116 : vector<8x128xf32>
    %119 = arith.divf %117, %118 : vector<8x128xf32>
    %120 = arith.subf %93, %105 : vector<8x128xf32>
    %121 = arith.mulf %120, %113 : vector<8x128xf32>
    %122 = arith.addf %121, %105 : vector<8x128xf32>
    %123 = vector.extract_strided_slice %104 {offsets = [0, 384], sizes = [8, 128], strides = [1, 1]} : vector<8x512xf32> to vector<8x128xf32>
    %124 = math.tanh %122 : vector<8x128xf32>
    %125 = arith.subf %124, %123 : vector<8x128xf32>
    %126 = arith.mulf %125, %119 : vector<8x128xf32>
    %127 = arith.addf %126, %123 : vector<8x128xf32>
    %128 = arith.index_cast %102 : i32 to index
    %c0_30 = arith.constant 0 : index
    %129 = vector.load %arg5[%128, %c0_30] : memref<64x128xf32, #tpu.memory_space<vmem>>, vector<8x128xf32>
    tpu.vector_store %arg5[%128, %c0_30], %127 {strides = array<i32>} : memref<64x128xf32, #tpu.memory_space<vmem>>, vector<8x128xf32>,
    %c4_i32 = arith.constant 4 : i32
    %c8_i32_31 = arith.constant 8 : i32
    %130 = arith.muli %c4_i32, %c8_i32_31 : i32
    %131 = tpu.assume_multiple %130, 8 : i32
    %132 = arith.index_cast %131 : i32 to index
    %c0_32 = arith.constant 0 : index
    %133 = vector.load %arg8[%132, %c0_32] : memref<64x512xf32, #tpu.memory_space<vmem>>, vector<8x512xf32>
    %134 = vector.extract_strided_slice %133 {offsets = [0, 0], sizes = [8, 128], strides = [1, 1]} : vector<8x512xf32> to vector<8x128xf32>
    %135 = vector.extract_strided_slice %133 {offsets = [0, 128], sizes = [8, 128], strides = [1, 1]} : vector<8x512xf32> to vector<8x128xf32>
    %136 = vector.extract_strided_slice %133 {offsets = [0, 256], sizes = [8, 128], strides = [1, 1]} : vector<8x512xf32> to vector<8x128xf32>
    %137 = arith.addf %135, %9 : vector<8x128xf32>
    %138 = arith.negf %137 : vector<8x128xf32>
    %139 = math.exp %138 : vector<8x128xf32>
    %cst_33 = arith.constant 1.000000e+00 : f32
    %140 = vector.broadcast %cst_33 : f32 to vector<8x128xf32>
    %141 = arith.addf %140, %139 : vector<8x128xf32>
    %142 = arith.divf %140, %141 : vector<8x128xf32>
    %143 = arith.addf %136, %12 : vector<8x128xf32>
    %144 = arith.negf %143 : vector<8x128xf32>
    %145 = math.exp %144 : vector<8x128xf32>
    %cst_34 = arith.constant 1.000000e+00 : f32
    %146 = vector.broadcast %cst_34 : f32 to vector<8x128xf32>
    %147 = arith.addf %146, %145 : vector<8x128xf32>
    %148 = arith.divf %146, %147 : vector<8x128xf32>
    %149 = arith.subf %122, %134 : vector<8x128xf32>
    %150 = arith.mulf %149, %142 : vector<8x128xf32>
    %151 = arith.addf %150, %134 : vector<8x128xf32>
    %152 = vector.extract_strided_slice %133 {offsets = [0, 384], sizes = [8, 128], strides = [1, 1]} : vector<8x512xf32> to vector<8x128xf32>
    %153 = math.tanh %151 : vector<8x128xf32>
    %154 = arith.subf %153, %152 : vector<8x128xf32>
    %155 = arith.mulf %154, %148 : vector<8x128xf32>
    %156 = arith.addf %155, %152 : vector<8x128xf32>
    %157 = arith.index_cast %131 : i32 to index
    %c0_35 = arith.constant 0 : index
    %158 = vector.load %arg5[%157, %c0_35] : memref<64x128xf32, #tpu.memory_space<vmem>>, vector<8x128xf32>
    tpu.vector_store %arg5[%157, %c0_35], %156 {strides = array<i32>} : memref<64x128xf32, #tpu.memory_space<vmem>>, vector<8x128xf32>,
    %c5_i32 = arith.constant 5 : i32
    %c8_i32_36 = arith.constant 8 : i32
    %159 = arith.muli %c5_i32, %c8_i32_36 : i32
    %160 = tpu.assume_multiple %159, 8 : i32
    %161 = arith.index_cast %160 : i32 to index
    %c0_37 = arith.constant 0 : index
    %162 = vector.load %arg8[%161, %c0_37] : memref<64x512xf32, #tpu.memory_space<vmem>>, vector<8x512xf32>
    %163 = vector.extract_strided_slice %162 {offsets = [0, 0], sizes = [8, 128], strides = [1, 1]} : vector<8x512xf32> to vector<8x128xf32>
    %164 = vector.extract_strided_slice %162 {offsets = [0, 128], sizes = [8, 128], strides = [1, 1]} : vector<8x512xf32> to vector<8x128xf32>
    %165 = vector.extract_strided_slice %162 {offsets = [0, 256], sizes = [8, 128], strides = [1, 1]} : vector<8x512xf32> to vector<8x128xf32>
    %166 = arith.addf %164, %9 : vector<8x128xf32>
    %167 = arith.negf %166 : vector<8x128xf32>
    %168 = math.exp %167 : vector<8x128xf32>
    %cst_38 = arith.constant 1.000000e+00 : f32
    %169 = vector.broadcast %cst_38 : f32 to vector<8x128xf32>
    %170 = arith.addf %169, %168 : vector<8x128xf32>
    %171 = arith.divf %169, %170 : vector<8x128xf32>
    %172 = arith.addf %165, %12 : vector<8x128xf32>
    %173 = arith.negf %172 : vector<8x128xf32>
    %174 = math.exp %173 : vector<8x128xf32>
    %cst_39 = arith.constant 1.000000e+00 : f32
    %175 = vector.broadcast %cst_39 : f32 to vector<8x128xf32>
    %176 = arith.addf %175, %174 : vector<8x128xf32>
    %177 = arith.divf %175, %176 : vector<8x128xf32>
    %178 = arith.subf %151, %163 : vector<8x128xf32>
    %179 = arith.mulf %178, %171 : vector<8x128xf32>
    %180 = arith.addf %179, %163 : vector<8x128xf32>
    %181 = vector.extract_strided_slice %162 {offsets = [0, 384], sizes = [8, 128], strides = [1, 1]} : vector<8x512xf32> to vector<8x128xf32>
    %182 = math.tanh %180 : vector<8x128xf32>
    %183 = arith.subf %182, %181 : vector<8x128xf32>
    %184 = arith.mulf %183, %177 : vector<8x128xf32>
    %185 = arith.addf %184, %181 : vector<8x128xf32>
    %186 = arith.index_cast %160 : i32 to index
    %c0_40 = arith.constant 0 : index
    %187 = vector.load %arg5[%186, %c0_40] : memref<64x128xf32, #tpu.memory_space<vmem>>, vector<8x128xf32>
    tpu.vector_store %arg5[%186, %c0_40], %185 {strides = array<i32>} : memref<64x128xf32, #tpu.memory_space<vmem>>, vector<8x128xf32>,
    %c6_i32 = arith.constant 6 : i32
    %c8_i32_41 = arith.constant 8 : i32
    %188 = arith.muli %c6_i32, %c8_i32_41 : i32
    %189 = tpu.assume_multiple %188, 8 : i32
    %190 = arith.index_cast %189 : i32 to index
    %c0_42 = arith.constant 0 : index
    %191 = vector.load %arg8[%190, %c0_42] : memref<64x512xf32, #tpu.memory_space<vmem>>, vector<8x512xf32>
    %192 = vector.extract_strided_slice %191 {offsets = [0, 0], sizes = [8, 128], strides = [1, 1]} : vector<8x512xf32> to vector<8x128xf32>
    %193 = vector.extract_strided_slice %191 {offsets = [0, 128], sizes = [8, 128], strides = [1, 1]} : vector<8x512xf32> to vector<8x128xf32>
    %194 = vector.extract_strided_slice %191 {offsets = [0, 256], sizes = [8, 128], strides = [1, 1]} : vector<8x512xf32> to vector<8x128xf32>
    %195 = arith.addf %193, %9 : vector<8x128xf32>
    %196 = arith.negf %195 : vector<8x128xf32>
    %197 = math.exp %196 : vector<8x128xf32>
    %cst_43 = arith.constant 1.000000e+00 : f32
    %198 = vector.broadcast %cst_43 : f32 to vector<8x128xf32>
    %199 = arith.addf %198, %197 : vector<8x128xf32>
    %200 = arith.divf %198, %199 : vector<8x128xf32>
    %201 = arith.addf %194, %12 : vector<8x128xf32>
    %202 = arith.negf %201 : vector<8x128xf32>
    %203 = math.exp %202 : vector<8x128xf32>
    %cst_44 = arith.constant 1.000000e+00 : f32
    %204 = vector.broadcast %cst_44 : f32 to vector<8x128xf32>
    %205 = arith.addf %204, %203 : vector<8x128xf32>
    %206 = arith.divf %204, %205 : vector<8x128xf32>
    %207 = arith.subf %180, %192 : vector<8x128xf32>
    %208 = arith.mulf %207, %200 : vector<8x128xf32>
    %209 = arith.addf %208, %192 : vector<8x128xf32>
    %210 = vector.extract_strided_slice %191 {offsets = [0, 384], sizes = [8, 128], strides = [1, 1]} : vector<8x512xf32> to vector<8x128xf32>
    %211 = math.tanh %209 : vector<8x128xf32>
    %212 = arith.subf %211, %210 : vector<8x128xf32>
    %213 = arith.mulf %212, %206 : vector<8x128xf32>
    %214 = arith.addf %213, %210 : vector<8x128xf32>
    %215 = arith.index_cast %189 : i32 to index
    %c0_45 = arith.constant 0 : index
    %216 = vector.load %arg5[%215, %c0_45] : memref<64x128xf32, #tpu.memory_space<vmem>>, vector<8x128xf32>
    tpu.vector_store %arg5[%215, %c0_45], %214 {strides = array<i32>} : memref<64x128xf32, #tpu.memory_space<vmem>>, vector<8x128xf32>,
    %c7_i32 = arith.constant 7 : i32
    %c8_i32_46 = arith.constant 8 : i32
    %217 = arith.muli %c7_i32, %c8_i32_46 : i32
    %218 = tpu.assume_multiple %217, 8 : i32
    %219 = arith.index_cast %218 : i32 to index
    %c0_47 = arith.constant 0 : index
    %220 = vector.load %arg8[%219, %c0_47] : memref<64x512xf32, #tpu.memory_space<vmem>>, vector<8x512xf32>
    %221 = vector.extract_strided_slice %220 {offsets = [0, 0], sizes = [8, 128], strides = [1, 1]} : vector<8x512xf32> to vector<8x128xf32>
    %222 = vector.extract_strided_slice %220 {offsets = [0, 128], sizes = [8, 128], strides = [1, 1]} : vector<8x512xf32> to vector<8x128xf32>
    %223 = vector.extract_strided_slice %220 {offsets = [0, 256], sizes = [8, 128], strides = [1, 1]} : vector<8x512xf32> to vector<8x128xf32>
    %224 = arith.addf %222, %9 : vector<8x128xf32>
    %225 = arith.negf %224 : vector<8x128xf32>
    %226 = math.exp %225 : vector<8x128xf32>
    %cst_48 = arith.constant 1.000000e+00 : f32
    %227 = vector.broadcast %cst_48 : f32 to vector<8x128xf32>
    %228 = arith.addf %227, %226 : vector<8x128xf32>
    %229 = arith.divf %227, %228 : vector<8x128xf32>
    %230 = arith.addf %223, %12 : vector<8x128xf32>
    %231 = arith.negf %230 : vector<8x128xf32>
    %232 = math.exp %231 : vector<8x128xf32>
    %cst_49 = arith.constant 1.000000e+00 : f32
    %233 = vector.broadcast %cst_49 : f32 to vector<8x128xf32>
    %234 = arith.addf %233, %232 : vector<8x128xf32>
    %235 = arith.divf %233, %234 : vector<8x128xf32>
    %236 = arith.subf %209, %221 : vector<8x128xf32>
    %237 = arith.mulf %236, %229 : vector<8x128xf32>
    %238 = arith.addf %237, %221 : vector<8x128xf32>
    %239 = vector.extract_strided_slice %220 {offsets = [0, 384], sizes = [8, 128], strides = [1, 1]} : vector<8x512xf32> to vector<8x128xf32>
    %240 = math.tanh %238 : vector<8x128xf32>
    %241 = arith.subf %240, %239 : vector<8x128xf32>
    %242 = arith.mulf %241, %235 : vector<8x128xf32>
    %243 = arith.addf %242, %239 : vector<8x128xf32>
    %244 = arith.index_cast %218 : i32 to index
    %c0_50 = arith.constant 0 : index
    %245 = vector.load %arg5[%244, %c0_50] : memref<64x128xf32, #tpu.memory_space<vmem>>, vector<8x128xf32>
    tpu.vector_store %arg5[%244, %c0_50], %243 {strides = array<i32>} : memref<64x128xf32, #tpu.memory_space<vmem>>, vector<8x128xf32>,
    %c8_i32_51 = arith.constant 8 : i32
    %c0_52 = arith.constant 0 : index
    %c0_53 = arith.constant 0 : index
    %246 = vector.load %arg7[%c0_52, %c0_53] : memref<8x128xf32, #tpu.memory_space<vmem>>, vector<8x128xf32>
    tpu.vector_store %arg7[%c0_52, %c0_53], %238 {strides = array<i32>} : memref<8x128xf32, #tpu.memory_space<vmem>>, vector<8x128xf32>,
    %c0_i32_54 = arith.constant 0 : i32
    %247 = arith.cmpi eq, %arg0, %c0_i32_54 : i32
    %248 = arith.extui %247 : i1 to i32
    %c0_i32_55 = arith.constant 0 : i32
    %249 = arith.cmpi ne, %248, %c0_i32_55 : i32
    scf.if %249 {
      %c0_56 = arith.constant 0 : index
      %c0_57 = arith.constant 0 : index
      %250 = vector.load %arg6[%c0_56, %c0_57] : memref<8x128xf32, #tpu.memory_space<vmem>>, vector<8x128xf32>
      tpu.vector_store %arg6[%c0_56, %c0_57], %238 {strides = array<i32>} : memref<8x128xf32, #tpu.memory_space<vmem>>, vector<8x128xf32>,
    } else {
    }
    return
  }
  func.func @transform_0(%arg0: i32) -> (i32, i32) {
    %c0_i32 = arith.constant 0 : i32
    %c0_i32_0 = arith.constant 0 : i32
    return %arg0, %c0_i32 : i32, i32
  }
  func.func @transform_1(%arg0: i32) -> (i32, i32) {
    %c0_i32 = arith.constant 0 : i32
    %c0_i32_0 = arith.constant 0 : i32
    %c0_i32_1 = arith.constant 0 : i32
    return %c0_i32, %c0_i32_0 : i32, i32
  }
  func.func @transform_2(%arg0: i32) -> (i32, i32) {
    %c0_i32 = arith.constant 0 : i32
    %c0_i32_0 = arith.constant 0 : i32
    %c0_i32_1 = arith.constant 0 : i32
    return %c0_i32, %c0_i32_0 : i32, i32
  }
  func.func @transform_3(%arg0: i32) -> (i32, i32) {
    %c0_i32 = arith.constant 0 : i32
    %c0_i32_0 = arith.constant 0 : i32
    %c0_i32_1 = arith.constant 0 : i32
    return %c0_i32, %c0_i32_0 : i32, i32
  }
  func.func @transform_4(%arg0: i32) -> (i32, i32) {
    %c0_i32 = arith.constant 0 : i32
    %c0_i32_0 = arith.constant 0 : i32
    return %arg0, %c0_i32 : i32, i32
  }
  func.func @transform_5(%arg0: i32) -> (i32, i32) {
    %c0_i32 = arith.constant 0 : i32
    %c0_i32_0 = arith.constant 0 : i32
    %c0_i32_1 = arith.constant 0 : i32
    return %c0_i32, %c0_i32_0 : i32, i32
  }
}

</mosaic_0001>

<llo_original>
// kernel: tpu_custom_call.1
$region0: #{tpu_custom_call.1}
  #allocation0 [shape = 'u32[]', space=smem, size = 0x4, offset = 0x4, fixed_abs, tag = 'smem constant byte address 0x4 - core index']
  #allocation1 [shape = 'u32[72,128]{1,0:T(1,128)}', space=vmem, size = 0x9000, scoped, tag = 'internal scratch']
  #allocation2 [shape = 'f32[8,128]{1,0:T(8,128)}', space=vmem, size = 0x1000, scoped, tag = 'scratch operand']
  #allocation3 [shape = 'f32[64,512]{1,0:T(8,128)}', space=vmem, size = 0x20000, scoped, tag = 'scratch operand']
  %s0 = inlined_call_operand.hbm [shape: bf16[64,128], index: 0, kind: input, shape index: {}]
  %s1 = inlined_call_operand.hbm [shape: bf16[128,512], index: 1, kind: input, shape index: {}]
  %s2 = inlined_call_operand.hbm [shape: f32[2,128], index: 2, kind: input, shape index: {}]
  %s3 = inlined_call_operand.hbm [shape: f32[8,128], index: 3, kind: input, shape index: {}]
  %s4 = inlined_call_operand.hbm [shape: f32[64,128], index: 4, kind: output, shape index: {0}]
  %s5 = inlined_call_operand.hbm [shape: f32[8,128], index: 5, kind: output, shape index: {1}]
  %6 = xla_tuple %s4, %s5
  %s7 = sld [smem:[#allocation0]]
  $region58: #{tpu_custom_call.1} parent=0
    _
  %s9 = ssub.s32 1, %s7
  %s10 = scalar_select 0, %s9, %s7
  $region1: #{tpu_custom_call.1} parent=0
    #allocation4 [shape = 'u8[16384]{0}', space=vmem, size = 0x4000, scoped, tag = 'input window, operand 0, single buffered']
    #allocation5 [shape = 's32[1]{0}', space=sflag, size = 0x4, scoped, tag = 'scoped memory for tpu_custom_call.1']
    #allocation6 [shape = 's32[1]{0}', space=sflag, size = 0x4, scoped, tag = 'scoped memory for tpu_custom_call.1']
    #allocation7 [shape = 'u8[131072]{0}', space=vmem, size = 0x20000, scoped, tag = 'input window, operand 1, single buffered']
    #allocation8 [shape = 's32[1]{0}', space=sflag, size = 0x4, scoped, tag = 'scoped memory for tpu_custom_call.1']
    #allocation9 [shape = 'u8[1024]{0}', space=vmem, size = 0x400, scoped, tag = 'input window, operand 2, single buffered']
    #allocation10 [shape = 'u8[4096]{0}', space=vmem, size = 0x1000, scoped, tag = 'input window, operand 3, single buffered']
    #allocation11 [shape = 's32[1]{0}', space=sflag, size = 0x4, scoped, tag = 'scoped memory for tpu_custom_call.1']
    #allocation12 [shape = 'u8[32768]{0}', space=vmem, size = 0x8000, scoped, tag = 'output window, operand 0, single buffered']
    #allocation13 [shape = 'u8[4096]{0}', space=vmem, size = 0x1000, scoped, tag = 'output window, operand 1, single buffered']
    #allocation14 [shape = 's32[1]{0}', space=sflag, size = 0x4, scoped, tag = 'scoped memory for tpu_custom_call.1']
    %11 = vsyncpa [#allocation5], 0
    %12 = vsyncpa [#allocation8], 0
    %13 = vsyncpa [#allocation11], 0
    %14 = vsyncpa [#allocation6], 0
    %15 = vsyncpa [#allocation14], 0
    // Predicated region
    $region2: #{tpu_custom_call.1} parent=1 // pred_check
      _
    $region3: #{tpu_custom_call.1} parent=1 // pred_check_branch
      %17 = sbr.rel (0) target = $region5
    $region4: #{tpu_custom_call.1} parent=1 // pred_region
      %19 = vsyncadd [#allocation5], 0
      %s20 = sshll.u32 %s0, 4
      %s21 = int_to_ptr.hbm [resolvable:$true] %s20
      %s22 = sshll.u32 [#allocation4], 4
      %s23 = int_to_ptr.vmem [resolvable:$true] %s22
      %28 = dma.hbm_to_vmem [thread:$0]  %s21, 512, %s23, [#allocation5], 64, 64, 4
    $region5: #{tpu_custom_call.1} parent=1 // pred_fallthru
      _
    // Predicated region
    $region6: #{tpu_custom_call.1} parent=1 // pred_check
      _
    $region7: #{tpu_custom_call.1} parent=1 // pred_check_branch
      %30 = sbr.rel (0) target = $region9
    $region8: #{tpu_custom_call.1} parent=1 // pred_region
      %32 = vsyncadd [#allocation8], 0
      %s33 = sshll.u32 %s1, 4
      %s34 = int_to_ptr.hbm [resolvable:$true] %s33
      %s35 = sshll.u32 [#allocation7], 4
      %s36 = int_to_ptr.vmem [resolvable:$true] %s35
      %41 = dma.hbm_to_vmem [thread:$0]  %s34, 4096, %s36, [#allocation8], 256, 256, 16
    $region9: #{tpu_custom_call.1} parent=1 // pred_fallthru
      _
    // Predicated region
    $region10: #{tpu_custom_call.1} parent=1 // pred_check
      _
    $region11: #{tpu_custom_call.1} parent=1 // pred_check_branch
      %43 = sbr.rel (0) target = $region13
    $region12: #{tpu_custom_call.1} parent=1 // pred_region
      %45 = vsyncadd [#allocation8], 0
      %s47 = sshll.u32 %s2, 4
      %s48 = int_to_ptr.hbm [resolvable:$true] %s47
      %s49 = sshll.u32 [#allocation9], 4
      %s50 = int_to_ptr.vmem [resolvable:$true] %s49
      %52 = dma.hbm_to_vmem [thread:$0]  %s48, 32, %s50, [#allocation8]
    $region13: #{tpu_custom_call.1} parent=1 // pred_fallthru
      _
    // Predicated region
    $region14: #{tpu_custom_call.1} parent=1 // pred_check
      _
    $region15: #{tpu_custom_call.1} parent=1 // pred_check_branch
      %54 = sbr.rel (0) target = $region17
    $region16: #{tpu_custom_call.1} parent=1 // pred_region
      %56 = vsyncadd [#allocation11], 0
      %s58 = sshll.u32 %s3, 4
      %s59 = int_to_ptr.hbm [resolvable:$true] %s58
      %s60 = sshll.u32 [#allocation10], 4
      %s61 = int_to_ptr.vmem [resolvable:$true] %s60
      %63 = dma.hbm_to_vmem [thread:$0]  %s59, 128, %s61, [#allocation11]
    $region17: #{tpu_custom_call.1} parent=1 // pred_fallthru
      _
    // Predicated region
    $region18: #{tpu_custom_call.1} parent=1 // pred_check
      _
    $region19: #{tpu_custom_call.1} parent=1 // pred_check_branch
      %65 = sbr.rel (0) target = $region21
    $region20: #{tpu_custom_call.1} parent=1 // pred_region
      %67 = dma.done [#allocation5], 512
    $region21: #{tpu_custom_call.1} parent=1 // pred_fallthru
      _
    // Predicated region
    $region22: #{tpu_custom_call.1} parent=1 // pred_check
      _
    $region23: #{tpu_custom_call.1} parent=1 // pred_check_branch
      %69 = sbr.rel (0) target = $region25
    $region24: #{tpu_custom_call.1} parent=1 // pred_region
      %71 = dma.done [#allocation8], 4096
    $region25: #{tpu_custom_call.1} parent=1 // pred_fallthru
      _
    // Predicated region
    $region26: #{tpu_custom_call.1} parent=1 // pred_check
      _
    $region27: #{tpu_custom_call.1} parent=1 // pred_check_branch
      %73 = sbr.rel (0) target = $region29
    $region28: #{tpu_custom_call.1} parent=1 // pred_region
      %75 = dma.done [#allocation8], 32
    $region29: #{tpu_custom_call.1} parent=1 // pred_fallthru
      _
    // Predicated region
    $region30: #{tpu_custom_call.1} parent=1 // pred_check
      _
    $region31: #{tpu_custom_call.1} parent=1 // pred_check_branch
      %77 = sbr.rel (0) target = $region33
    $region32: #{tpu_custom_call.1} parent=1 // pred_region
      %79 = dma.done [#allocation11], 128
    $region33: #{tpu_custom_call.1} parent=1 // pred_fallthru
      _
    %p80 = scmp.eq.s32.totalorder 0, 0
    // Predicated region
    $region34: #{tpu_custom_call.1} parent=1 // pred_check
      %p81 = pneg %p80
    $region35: #{tpu_custom_call.1} parent=1 // pred_check_branch
      %83 = sbr.rel (%p81) target = $region37
    $region36: #{tpu_custom_call.1} parent=1 // pred_region
      %v84 = vld [vmem:[#allocation10] sm:$0xff]
      %85 = vst [vmem:[#allocation2] sm:$0xff] %v84
    $region37: #{tpu_custom_call.1} parent=1 // pred_fallthru
      _
    %v86 = vld [vmem:[#allocation4] sm:$0xf]
    %v87 = vld [vmem:[#allocation4 + $0x4] sm:$0xf]
    %v88 = vld [vmem:[#allocation4 + $0x8] sm:$0xf]
    %v89 = vld [vmem:[#allocation4 + $0xc] sm:$0xf]
    %v90 = vld [vmem:[#allocation4 + $0x10] sm:$0xf]
    %v91 = vld [vmem:[#allocation4 + $0x14] sm:$0xf]
    %v92 = vld [vmem:[#allocation4 + $0x18] sm:$0xf]
    %v93 = vld [vmem:[#allocation4 + $0x1c] sm:$0xf]
    %v94 = vld [vmem:[#allocation7] sm:$0xff]
    %v95 = vld [vmem:[#allocation7 + $0x8] sm:$0xff]
    %v96 = vld [vmem:[#allocation7 + $0x10] sm:$0xff]
    %v97 = vld [vmem:[#allocation7 + $0x18] sm:$0xff]
    %v98 = vld [vmem:[#allocation7 + $0x20] sm:$0xff]
    %v99 = vld [vmem:[#allocation7 + $0x28] sm:$0xff]
    %v100 = vld [vmem:[#allocation7 + $0x30] sm:$0xff]
    %v101 = vld [vmem:[#allocation7 + $0x38] sm:$0xff]
    %v102 = vld [vmem:[#allocation7 + $0x40] sm:$0xff]
    %v103 = vld [vmem:[#allocation7 + $0x48] sm:$0xff]
    %v104 = vld [vmem:[#allocation7 + $0x50] sm:$0xff]
    %v105 = vld [vmem:[#allocation7 + $0x58] sm:$0xff]
    %v106 = vld [vmem:[#allocation7 + $0x60] sm:$0xff]
    %v107 = vld [vmem:[#allocation7 + $0x68] sm:$0xff]
    %v108 = vld [vmem:[#allocation7 + $0x70] sm:$0xff]
    %v109 = vld [vmem:[#allocation7 + $0x78] sm:$0xff]
    %v110 = vld [vmem:[#allocation7 + $0x80] sm:$0xff]
    %v111 = vld [vmem:[#allocation7 + $0x88] sm:$0xff]
    %v112 = vld [vmem:[#allocation7 + $0x90] sm:$0xff]
    %v113 = vld [vmem:[#allocation7 + $0x98] sm:$0xff]
    %v114 = vld [vmem:[#allocation7 + $0xa0] sm:$0xff]
    %v115 = vld [vmem:[#allocation7 + $0xa8] sm:$0xff]
    %v116 = vld [vmem:[#allocation7 + $0xb0] sm:$0xff]
    %v117 = vld [vmem:[#allocation7 + $0xb8] sm:$0xff]
    %v118 = vld [vmem:[#allocation7 + $0xc0] sm:$0xff]
    %v119 = vld [vmem:[#allocation7 + $0xc8] sm:$0xff]
    %v120 = vld [vmem:[#allocation7 + $0xd0] sm:$0xff]
    %v121 = vld [vmem:[#allocation7 + $0xd8] sm:$0xff]
    %v122 = vld [vmem:[#allocation7 + $0xe0] sm:$0xff]
    %v123 = vld [vmem:[#allocation7 + $0xe8] sm:$0xff]
    %v124 = vld [vmem:[#allocation7 + $0xf0] sm:$0xff]
    %v125 = vld [vmem:[#allocation7 + $0xf8] sm:$0xff]
    %v134 = vunpack.c.l.b16 %v86
    %v135 = vunpack.c.l.b16 %v87
    %v136 = vunpack.c.l.b16 %v88
    %v137 = vunpack.c.l.b16 %v89
    %v138 = vunpack.c.l.b16 %v90
    %v139 = vunpack.c.l.b16 %v91
    %v140 = vunpack.c.l.b16 %v92
    %v141 = vunpack.c.l.b16 %v93
    %v142 = vpack.c.b16 %v135, %v134
    %v143 = vpack.c.b16 %v137, %v136
    %v144 = vpack.c.b16 %v139, %v138
    %v145 = vpack.c.b16 %v141, %v140
    %v182 = vunpack.c.l.b16 %v94
    %v183 = vunpack.c.h.b16 %v94
    %v184 = vunpack.c.l.b16 %v95
    %v185 = vunpack.c.h.b16 %v95
    %v186 = vunpack.c.l.b16 %v96
    %v187 = vunpack.c.h.b16 %v96
    %v188 = vunpack.c.l.b16 %v97
    %v189 = vunpack.c.h.b16 %v97
    %v190 = vunpack.c.l.b16 %v98
    %v191 = vunpack.c.h.b16 %v98
    %v192 = vunpack.c.l.b16 %v99
    %v193 = vunpack.c.h.b16 %v99
    %v194 = vunpack.c.l.b16 %v100
    %v195 = vunpack.c.h.b16 %v100
    %v196 = vunpack.c.l.b16 %v101
    %v197 = vunpack.c.h.b16 %v101
    %v198 = vunpack.c.l.b16 %v102
    %v199 = vunpack.c.h.b16 %v102
    %v200 = vunpack.c.l.b16 %v103
    %v201 = vunpack.c.h.b16 %v103
    %v202 = vunpack.c.l.b16 %v104
    %v203 = vunpack.c.h.b16 %v104
    %v204 = vunpack.c.l.b16 %v105
    %v205 = vunpack.c.h.b16 %v105
    %v206 = vunpack.c.l.b16 %v106
    %v207 = vunpack.c.h.b16 %v106
    %v208 = vunpack.c.l.b16 %v107
    %v209 = vunpack.c.h.b16 %v107
    %v210 = vunpack.c.l.b16 %v108
    %v211 = vunpack.c.h.b16 %v108
    %v212 = vunpack.c.l.b16 %v109
    %v213 = vunpack.c.h.b16 %v109
    %v214 = vunpack.c.l.b16 %v110
    %v215 = vunpack.c.h.b16 %v110
    %v216 = vunpack.c.l.b16 %v111
    %v217 = vunpack.c.h.b16 %v111
    %v218 = vunpack.c.l.b16 %v112
    %v219 = vunpack.c.h.b16 %v112
    %v220 = vunpack.c.l.b16 %v113
    %v221 = vunpack.c.h.b16 %v113
    %v222 = vunpack.c.l.b16 %v114
    %v223 = vunpack.c.h.b16 %v114
    %v224 = vunpack.c.l.b16 %v115
    %v225 = vunpack.c.h.b16 %v115
    %v226 = vunpack.c.l.b16 %v116
    %v227 = vunpack.c.h.b16 %v116
    %v228 = vunpack.c.l.b16 %v117
    %v229 = vunpack.c.h.b16 %v117
    %v230 = vunpack.c.l.b16 %v118
    %v231 = vunpack.c.h.b16 %v118
    %v232 = vunpack.c.l.b16 %v119
    %v233 = vunpack.c.h.b16 %v119
    %v234 = vunpack.c.l.b16 %v120
    %v235 = vunpack.c.h.b16 %v120
    %v236 = vunpack.c.l.b16 %v121
    %v237 = vunpack.c.h.b16 %v121
    %v238 = vunpack.c.l.b16 %v122
    %v239 = vunpack.c.h.b16 %v122
    %v240 = vunpack.c.l.b16 %v123
    %v241 = vunpack.c.h.b16 %v123
    %v242 = vunpack.c.l.b16 %v124
    %v243 = vunpack.c.h.b16 %v124
    %v244 = vunpack.c.l.b16 %v125
    %v245 = vunpack.c.h.b16 %v125
    %v246 = vpack.c.b16 %v186, %v182
    %v247 = vpack.c.b16 %v187, %v183
    %v248 = vpack.c.b16 %v188, %v184
    %v249 = vpack.c.b16 %v189, %v185
    %v250 = vpack.c.b16 %v194, %v190
    %v251 = vpack.c.b16 %v195, %v191
    %v252 = vpack.c.b16 %v196, %v192
    %v253 = vpack.c.b16 %v197, %v193
    %v254 = vpack.c.b16 %v202, %v198
    %v255 = vpack.c.b16 %v203, %v199
    %v256 = vpack.c.b16 %v204, %v200
    %v257 = vpack.c.b16 %v205, %v201
    %v258 = vpack.c.b16 %v210, %v206
    %v259 = vpack.c.b16 %v211, %v207
    %v260 = vpack.c.b16 %v212, %v208
    %v261 = vpack.c.b16 %v213, %v209
    %v262 = vpack.c.b16 %v218, %v214
    %v263 = vpack.c.b16 %v219, %v215
    %v264 = vpack.c.b16 %v220, %v216
    %v265 = vpack.c.b16 %v221, %v217
    %v266 = vpack.c.b16 %v226, %v222
    %v267 = vpack.c.b16 %v227, %v223
    %v268 = vpack.c.b16 %v228, %v224
    %v269 = vpack.c.b16 %v229, %v225
    %v270 = vpack.c.b16 %v234, %v230
    %v271 = vpack.c.b16 %v235, %v231
    %v272 = vpack.c.b16 %v236, %v232
    %v273 = vpack.c.b16 %v237, %v233
    %v274 = vpack.c.b16 %v242, %v238
    %v275 = vpack.c.b16 %v243, %v239
    %v276 = vpack.c.b16 %v244, %v240
    %v277 = vpack.c.b16 %v245, %v241
    %310 = vmatpush.bf16.msra.mxu0 %v274
    %311 = vmatpush.bf16.msra.mxu0 %v270
    %312 = vmatpush.bf16.msra.mxu0 %v266
    %313 = vmatpush.bf16.msra.mxu0 %v262
    %314 = vmatpush.bf16.msra.mxu0 %v258
    %315 = vmatpush.bf16.msra.mxu0 %v254
    %316 = vmatpush.bf16.msra.mxu0 %v250
    %317 = vmatpush.bf16.msra.mxu0 %v246
    %318 = vmatmul.bf16.gmra.mxu0 %v142
    %v319 = vpop.f32.mrf.mxu0
    %v320 = vadd.f32 0.0, %v319
    %v321 = vpop.f32.mrf.mxu0
    %v322 = vadd.f32 0.0, %v321
    %323 = vmatmul.bf16.gmra.mxu0 %v143
    %v324 = vpop.f32.mrf.mxu0
    %v325 = vadd.f32 0.0, %v324
    %v326 = vpop.f32.mrf.mxu0
    %v327 = vadd.f32 0.0, %v326
    %328 = vmatmul.bf16.gmra.mxu0 %v144
    %v329 = vpop.f32.mrf.mxu0
    %v330 = vadd.f32 0.0, %v329
    %v331 = vpop.f32.mrf.mxu0
    %v332 = vadd.f32 0.0, %v331
    %333 = vmatmul.bf16.gmra.mxu0 %v145
    %v334 = vpop.f32.mrf.mxu0
    %v335 = vadd.f32 0.0, %v334
    %v336 = vpop.f32.mrf.mxu0
    %v337 = vadd.f32 0.0, %v336
    %338 = vdwg.mxu0
    %339 = vmatpush.bf16.msra.mxu0 %v275
    %340 = vmatpush.bf16.msra.mxu0 %v271
    %341 = vmatpush.bf16.msra.mxu0 %v267
    %342 = vmatpush.bf16.msra.mxu0 %v263
    %343 = vmatpush.bf16.msra.mxu0 %v259
    %344 = vmatpush.bf16.msra.mxu0 %v255
    %345 = vmatpush.bf16.msra.mxu0 %v251
    %346 = vmatpush.bf16.msra.mxu0 %v247
    %347 = vmatmul.bf16.gmra.mxu0 %v142
    %v348 = vpop.f32.mrf.mxu0
    %v349 = vadd.f32 0.0, %v348
    %v350 = vpop.f32.mrf.mxu0
    %v351 = vadd.f32 0.0, %v350
    %352 = vmatmul.bf16.gmra.mxu0 %v143
    %v353 = vpop.f32.mrf.mxu0
    %v354 = vadd.f32 0.0, %v353
    %v355 = vpop.f32.mrf.mxu0
    %v356 = vadd.f32 0.0, %v355
    %357 = vmatmul.bf16.gmra.mxu0 %v144
    %v358 = vpop.f32.mrf.mxu0
    %v359 = vadd.f32 0.0, %v358
    %v360 = vpop.f32.mrf.mxu0
    %v361 = vadd.f32 0.0, %v360
    %362 = vmatmul.bf16.gmra.mxu0 %v145
    %v363 = vpop.f32.mrf.mxu0
    %v364 = vadd.f32 0.0, %v363
    %v365 = vpop.f32.mrf.mxu0
    %v366 = vadd.f32 0.0, %v365
    %367 = vdwg.mxu0
    %368 = vmatpush.bf16.msra.mxu0 %v276
    %369 = vmatpush.bf16.msra.mxu0 %v272
    %370 = vmatpush.bf16.msra.mxu0 %v268
    %371 = vmatpush.bf16.msra.mxu0 %v264
    %372 = vmatpush.bf16.msra.mxu0 %v260
    %373 = vmatpush.bf16.msra.mxu0 %v256
    %374 = vmatpush.bf16.msra.mxu0 %v252
    %375 = vmatpush.bf16.msra.mxu0 %v248
    %376 = vmatmul.bf16.gmra.mxu0 %v142
    %v377 = vpop.f32.mrf.mxu0
    %v378 = vadd.f32 0.0, %v377
    %v379 = vpop.f32.mrf.mxu0
    %v380 = vadd.f32 0.0, %v379
    %381 = vmatmul.bf16.gmra.mxu0 %v143
    %v382 = vpop.f32.mrf.mxu0
    %v383 = vadd.f32 0.0, %v382
    %v384 = vpop.f32.mrf.mxu0
    %v385 = vadd.f32 0.0, %v384
    %386 = vmatmul.bf16.gmra.mxu0 %v144
    %v387 = vpop.f32.mrf.mxu0
    %v388 = vadd.f32 0.0, %v387
    %v389 = vpop.f32.mrf.mxu0
    %v390 = vadd.f32 0.0, %v389
    %391 = vmatmul.bf16.gmra.mxu0 %v145
    %v392 = vpop.f32.mrf.mxu0
    %v393 = vadd.f32 0.0, %v392
    %v394 = vpop.f32.mrf.mxu0
    %v395 = vadd.f32 0.0, %v394
    %396 = vdwg.mxu0
    %397 = vmatpush.bf16.msra.mxu0 %v277
    %398 = vmatpush.bf16.msra.mxu0 %v273
    %399 = vmatpush.bf16.msra.mxu0 %v269
    %400 = vmatpush.bf16.msra.mxu0 %v265
    %401 = vmatpush.bf16.msra.mxu0 %v261
    %402 = vmatpush.bf16.msra.mxu0 %v257
    %403 = vmatpush.bf16.msra.mxu0 %v253
    %404 = vmatpush.bf16.msra.mxu0 %v249
    %405 = vmatmul.bf16.gmra.mxu0 %v142
    %v406 = vpop.f32.mrf.mxu0
    %v407 = vadd.f32 0.0, %v406
    %v408 = vpop.f32.mrf.mxu0
    %v409 = vadd.f32 0.0, %v408
    %410 = vmatmul.bf16.gmra.mxu0 %v143
    %v411 = vpop.f32.mrf.mxu0
    %v412 = vadd.f32 0.0, %v411
    %v413 = vpop.f32.mrf.mxu0
    %v414 = vadd.f32 0.0, %v413
    %415 = vmatmul.bf16.gmra.mxu0 %v144
    %v416 = vpop.f32.mrf.mxu0
    %v417 = vadd.f32 0.0, %v416
    %v418 = vpop.f32.mrf.mxu0
    %v419 = vadd.f32 0.0, %v418
    %420 = vmatmul.bf16.gmra.mxu0 %v145
    %v421 = vpop.f32.mrf.mxu0
    %v422 = vadd.f32 0.0, %v421
    %v423 = vpop.f32.mrf.mxu0
    %v424 = vadd.f32 0.0, %v423
    %425 = vdwg.mxu0
    %426 = vst [vmem:[#allocation3] sm:$0xff] %v320
    %427 = vst [vmem:[#allocation3 + $0x8] sm:$0xff] %v349
    %428 = vst [vmem:[#allocation3 + $0x10] sm:$0xff] %v378
    %429 = vst [vmem:[#allocation3 + $0x18] sm:$0xff] %v407
    %430 = vst [vmem:[#allocation3 + $0x20] sm:$0xff] %v322
    %431 = vst [vmem:[#allocation3 + $0x28] sm:$0xff] %v351
    %432 = vst [vmem:[#allocation3 + $0x30] sm:$0xff] %v380
    %433 = vst [vmem:[#allocation3 + $0x38] sm:$0xff] %v409
    %434 = vst [vmem:[#allocation3 + $0x40] sm:$0xff] %v325
    %435 = vst [vmem:[#allocation3 + $0x48] sm:$0xff] %v354
    %436 = vst [vmem:[#allocation3 + $0x50] sm:$0xff] %v383
    %437 = vst [vmem:[#allocation3 + $0x58] sm:$0xff] %v412
    %438 = vst [vmem:[#allocation3 + $0x60] sm:$0xff] %v327
    %439 = vst [vmem:[#allocation3 + $0x68] sm:$0xff] %v356
    %440 = vst [vmem:[#allocation3 + $0x70] sm:$0xff] %v385
    %441 = vst [vmem:[#allocation3 + $0x78] sm:$0xff] %v414
    %442 = vst [vmem:[#allocation3 + $0x80] sm:$0xff] %v330
    %443 = vst [vmem:[#allocation3 + $0x88] sm:$0xff] %v359
    %444 = vst [vmem:[#allocation3 + $0x90] sm:$0xff] %v388
    %445 = vst [vmem:[#allocation3 + $0x98] sm:$0xff] %v417
    %446 = vst [vmem:[#allocation3 + $0xa0] sm:$0xff] %v332
    %447 = vst [vmem:[#allocation3 + $0xa8] sm:$0xff] %v361
    %448 = vst [vmem:[#allocation3 + $0xb0] sm:$0xff] %v390
    %449 = vst [vmem:[#allocation3 + $0xb8] sm:$0xff] %v419
    %450 = vst [vmem:[#allocation3 + $0xc0] sm:$0xff] %v335
    %451 = vst [vmem:[#allocation3 + $0xc8] sm:$0xff] %v364
    %452 = vst [vmem:[#allocation3 + $0xd0] sm:$0xff] %v393
    %453 = vst [vmem:[#allocation3 + $0xd8] sm:$0xff] %v422
    %454 = vst [vmem:[#allocation3 + $0xe0] sm:$0xff] %v337
    %455 = vst [vmem:[#allocation3 + $0xe8] sm:$0xff] %v366
    %456 = vst [vmem:[#allocation3 + $0xf0] sm:$0xff] %v395
    %457 = vst [vmem:[#allocation3 + $0xf8] sm:$0xff] %v424
    %v458 = vld [vmem:[#allocation9] sm:$0x1]
    %v459 = vperm.slane %v458, 0
    %v460 = vld [vmem:[#allocation9 + $0x1] sm:$0x1]
    %v461 = vperm.slane %v460, 0
    %v462 = vld [vmem:[#allocation2] sm:$0xff]
    %s463 = smul.u32 0, 4
    %s464 = smul.addr %s463, 8
    %s465 = scalar_lea.vmem [#allocation3], %s464
    %v466 = vld [vmem:[%s465] sm:$0xff]
    %v467 = vld [vmem:[%s465 + $0x8] sm:$0xff]
    %v468 = vld [vmem:[%s465 + $0x10] sm:$0xff]
    %v469 = vld [vmem:[%s465 + $0x18] sm:$0xff]
    %v470 = vadd.f32 %v467, %v459
    %v471 = vxor.u32 %v470, 2147483648
    %v472 = vmul.f32 %v471, 1.442695
    %v473 = vpow.pop %v472
    %v474 = vadd.f32 %v473, 1.0
    %v475 = vrcp.pop %v474
    %v476 = vmul.f32 %v474, %v475
    %v477 = vsub.f32 1.0, %v476
    %v478 = vmul.f32 %v475, %v477
    %v479 = vadd.f32 %v475, %v478
    %vm480 = vweird.f32 %v474
    %vm481 = vweird.f32 %v475
    %vm482 = vmor %vm480, %vm481
    %v483 = vsel %vm482, %v475, %v479
    %v484 = vand.u32 2147483647, %v474
    %vm485 = vcmp.eq.f32.partialorder %v484, 8.507059e+37
    %v486 = vand.u32 %v474, 2147483648
    %v487 = vor.u32 1.1754944e-38, %v486
    %v488 = vsel %vm485, %v487, %v483
    %v489 = vmul.f32 1.0, %v488
    %v490 = vadd.f32 %v468, %v461
    %v491 = vxor.u32 %v490, 2147483648
    %v492 = vmul.f32 %v491, 1.442695
    %v493 = vpow.pop %v492
    %v494 = vadd.f32 %v493, 1.0
    %v495 = vrcp.pop %v494
    %v496 = vmul.f32 %v494, %v495
    %v497 = vsub.f32 1.0, %v496
    %v498 = vmul.f32 %v495, %v497
    %v499 = vadd.f32 %v495, %v498
    %vm500 = vweird.f32 %v494
    %vm501 = vweird.f32 %v495
    %vm502 = vmor %vm500, %vm501
    %v503 = vsel %vm502, %v495, %v499
    %v504 = vand.u32 2147483647, %v494
    %vm505 = vcmp.eq.f32.partialorder %v504, 8.507059e+37
    %v506 = vand.u32 %v494, 2147483648
    %v507 = vor.u32 1.1754944e-38, %v506
    %v508 = vsel %vm505, %v507, %v503
    %v509 = vmul.f32 1.0, %v508
    %v510 = vsub.f32 %v462, %v466
    %v511 = vmul.f32 %v510, %v489
    %v512 = vadd.f32 %v511, %v466
    %v513 = vtanh.pop %v512
    %v514 = vsub.f32 %v513, %v469
    %v515 = vmul.f32 %v514, %v509
    %v516 = vadd.f32 %v515, %v469
    %517 = vst [vmem:[#allocation12] sm:$0xff] %v516
    %s518 = smul.u32 1, 4
    %s519 = smul.addr %s518, 8
    %s520 = scalar_lea.vmem [#allocation3], %s519
    %v521 = vld [vmem:[%s520] sm:$0xff]
    %v522 = vld [vmem:[%s520 + $0x8] sm:$0xff]
    %v523 = vld [vmem:[%s520 + $0x10] sm:$0xff]
    %v524 = vld [vmem:[%s520 + $0x18] sm:$0xff]
    %v525 = vadd.f32 %v522, %v459
    %v526 = vxor.u32 %v525, 2147483648
    %v527 = vmul.f32 %v526, 1.442695
    %v528 = vpow.pop %v527
    %v529 = vadd.f32 %v528, 1.0
    %v530 = vrcp.pop %v529
    %v531 = vmul.f32 %v529, %v530
    %v532 = vsub.f32 1.0, %v531
    %v533 = vmul.f32 %v530, %v532
    %v534 = vadd.f32 %v530, %v533
    %vm535 = vweird.f32 %v529
    %vm536 = vweird.f32 %v530
    %vm537 = vmor %vm535, %vm536
    %v538 = vsel %vm537, %v530, %v534
    %v539 = vand.u32 2147483647, %v529
    %vm540 = vcmp.eq.f32.partialorder %v539, 8.507059e+37
    %v541 = vand.u32 %v529, 2147483648
    %v542 = vor.u32 1.1754944e-38, %v541
    %v543 = vsel %vm540, %v542, %v538
    %v544 = vmul.f32 1.0, %v543
    %v545 = vadd.f32 %v523, %v461
    %v546 = vxor.u32 %v545, 2147483648
    %v547 = vmul.f32 %v546, 1.442695
    %v548 = vpow.pop %v547
    %v549 = vadd.f32 %v548, 1.0
    %v550 = vrcp.pop %v549
    %v551 = vmul.f32 %v549, %v550
    %v552 = vsub.f32 1.0, %v551
    %v553 = vmul.f32 %v550, %v552
    %v554 = vadd.f32 %v550, %v553
    %vm555 = vweird.f32 %v549
    %vm556 = vweird.f32 %v550
    %vm557 = vmor %vm555, %vm556
    %v558 = vsel %vm557, %v550, %v554
    %v559 = vand.u32 2147483647, %v549
    %vm560 = vcmp.eq.f32.partialorder %v559, 8.507059e+37
    %v561 = vand.u32 %v549, 2147483648
    %v562 = vor.u32 1.1754944e-38, %v561
    %v563 = vsel %vm560, %v562, %v558
    %v564 = vmul.f32 1.0, %v563
    %v565 = vsub.f32 %v512, %v521
    %v566 = vmul.f32 %v565, %v544
    %v567 = vadd.f32 %v566, %v521
    %v568 = vtanh.pop %v567
    %v569 = vsub.f32 %v568, %v524
    %v570 = vmul.f32 %v569, %v564
    %v571 = vadd.f32 %v570, %v524
    %s572 = scalar_lea.vmem [#allocation12], 8
    %573 = vst [vmem:[%s572] sm:$0xff] %v571
    %s574 = smul.u32 2, 4
    %s575 = smul.addr %s574, 8
    %s576 = scalar_lea.vmem [#allocation3], %s575
    %v577 = vld [vmem:[%s576] sm:$0xff]
    %v578 = vld [vmem:[%s576 + $0x8] sm:$0xff]
    %v579 = vld [vmem:[%s576 + $0x10] sm:$0xff]
    %v580 = vld [vmem:[%s576 + $0x18] sm:$0xff]
    %v581 = vadd.f32 %v578, %v459
    %v582 = vxor.u32 %v581, 2147483648
    %v583 = vmul.f32 %v582, 1.442695
    %v584 = vpow.pop %v583
    %v585 = vadd.f32 %v584, 1.0
    %v586 = vrcp.pop %v585
    %v587 = vmul.f32 %v585, %v586
    %v588 = vsub.f32 1.0, %v587
    %v589 = vmul.f32 %v586, %v588
    %v590 = vadd.f32 %v586, %v589
    %vm591 = vweird.f32 %v585
    %vm592 = vweird.f32 %v586
    %vm593 = vmor %vm591, %vm592
    %v594 = vsel %vm593, %v586, %v590
    %v595 = vand.u32 2147483647, %v585
    %vm596 = vcmp.eq.f32.partialorder %v595, 8.507059e+37
    %v597 = vand.u32 %v585, 2147483648
    %v598 = vor.u32 1.1754944e-38, %v597
    %v599 = vsel %vm596, %v598, %v594
    %v600 = vmul.f32 1.0, %v599
    %v601 = vadd.f32 %v579, %v461
    %v602 = vxor.u32 %v601, 2147483648
    %v603 = vmul.f32 %v602, 1.442695
    %v604 = vpow.pop %v603
    %v605 = vadd.f32 %v604, 1.0
    %v606 = vrcp.pop %v605
    %v607 = vmul.f32 %v605, %v606
    %v608 = vsub.f32 1.0, %v607
    %v609 = vmul.f32 %v606, %v608
    %v610 = vadd.f32 %v606, %v609
    %vm611 = vweird.f32 %v605
    %vm612 = vweird.f32 %v606
    %vm613 = vmor %vm611, %vm612
    %v614 = vsel %vm613, %v606, %v610
    %v615 = vand.u32 2147483647, %v605
    %vm616 = vcmp.eq.f32.partialorder %v615, 8.507059e+37
    %v617 = vand.u32 %v605, 2147483648
    %v618 = vor.u32 1.1754944e-38, %v617
    %v619 = vsel %vm616, %v618, %v614
    %v620 = vmul.f32 1.0, %v619
    %v621 = vsub.f32 %v567, %v577
    %v622 = vmul.f32 %v621, %v600
    %v623 = vadd.f32 %v622, %v577
    %v624 = vtanh.pop %v623
    %v625 = vsub.f32 %v624, %v580
    %v626 = vmul.f32 %v625, %v620
    %v627 = vadd.f32 %v626, %v580
    %s628 = scalar_lea.vmem [#allocation12], 16
    %629 = vst [vmem:[%s628] sm:$0xff] %v627
    %s630 = smul.u32 3, 4
    %s631 = smul.addr %s630, 8
    %s632 = scalar_lea.vmem [#allocation3], %s631
    %v633 = vld [vmem:[%s632] sm:$0xff]
    %v634 = vld [vmem:[%s632 + $0x8] sm:$0xff]
    %v635 = vld [vmem:[%s632 + $0x10] sm:$0xff]
    %v636 = vld [vmem:[%s632 + $0x18] sm:$0xff]
    %v637 = vadd.f32 %v634, %v459
    %v638 = vxor.u32 %v637, 2147483648
    %v639 = vmul.f32 %v638, 1.442695
    %v640 = vpow.pop %v639
    %v641 = vadd.f32 %v640, 1.0
    %v642 = vrcp.pop %v641
    %v643 = vmul.f32 %v641, %v642
    %v644 = vsub.f32 1.0, %v643
    %v645 = vmul.f32 %v642, %v644
    %v646 = vadd.f32 %v642, %v645
    %vm647 = vweird.f32 %v641
    %vm648 = vweird.f32 %v642
    %vm649 = vmor %vm647, %vm648
    %v650 = vsel %vm649, %v642, %v646
    %v651 = vand.u32 2147483647, %v641
    %vm652 = vcmp.eq.f32.partialorder %v651, 8.507059e+37
    %v653 = vand.u32 %v641, 2147483648
    %v654 = vor.u32 1.1754944e-38, %v653
    %v655 = vsel %vm652, %v654, %v650
    %v656 = vmul.f32 1.0, %v655
    %v657 = vadd.f32 %v635, %v461
    %v658 = vxor.u32 %v657, 2147483648
    %v659 = vmul.f32 %v658, 1.442695
    %v660 = vpow.pop %v659
    %v661 = vadd.f32 %v660, 1.0
    %v662 = vrcp.pop %v661
    %v663 = vmul.f32 %v661, %v662
    %v664 = vsub.f32 1.0, %v663
    %v665 = vmul.f32 %v662, %v664
    %v666 = vadd.f32 %v662, %v665
    %vm667 = vweird.f32 %v661
    %vm668 = vweird.f32 %v662
    %vm669 = vmor %vm667, %vm668
    %v670 = vsel %vm669, %v662, %v666
    %v671 = vand.u32 2147483647, %v661
    %vm672 = vcmp.eq.f32.partialorder %v671, 8.507059e+37
    %v673 = vand.u32 %v661, 2147483648
    %v674 = vor.u32 1.1754944e-38, %v673
    %v675 = vsel %vm672, %v674, %v670
    %v676 = vmul.f32 1.0, %v675
    %v677 = vsub.f32 %v623, %v633
    %v678 = vmul.f32 %v677, %v656
    %v679 = vadd.f32 %v678, %v633
    %v680 = vtanh.pop %v679
    %v681 = vsub.f32 %v680, %v636
    %v682 = vmul.f32 %v681, %v676
    %v683 = vadd.f32 %v682, %v636
    %s684 = scalar_lea.vmem [#allocation12], 24
    %685 = vst [vmem:[%s684] sm:$0xff] %v683
    %s686 = smul.u32 4, 4
    %s687 = smul.addr %s686, 8
    %s688 = scalar_lea.vmem [#allocation3], %s687
    %v689 = vld [vmem:[%s688] sm:$0xff]
    %v690 = vld [vmem:[%s688 + $0x8] sm:$0xff]
    %v691 = vld [vmem:[%s688 + $0x10] sm:$0xff]
    %v692 = vld [vmem:[%s688 + $0x18] sm:$0xff]
    %v693 = vadd.f32 %v690, %v459
    %v694 = vxor.u32 %v693, 2147483648
    %v695 = vmul.f32 %v694, 1.442695
    %v696 = vpow.pop %v695
    %v697 = vadd.f32 %v696, 1.0
    %v698 = vrcp.pop %v697
    %v699 = vmul.f32 %v697, %v698
    %v700 = vsub.f32 1.0, %v699
    %v701 = vmul.f32 %v698, %v700
    %v702 = vadd.f32 %v698, %v701
    %vm703 = vweird.f32 %v697
    %vm704 = vweird.f32 %v698
    %vm705 = vmor %vm703, %vm704
    %v706 = vsel %vm705, %v698, %v702
    %v707 = vand.u32 2147483647, %v697
    %vm708 = vcmp.eq.f32.partialorder %v707, 8.507059e+37
    %v709 = vand.u32 %v697, 2147483648
    %v710 = vor.u32 1.1754944e-38, %v709
    %v711 = vsel %vm708, %v710, %v706
    %v712 = vmul.f32 1.0, %v711
    %v713 = vadd.f32 %v691, %v461
    %v714 = vxor.u32 %v713, 2147483648
    %v715 = vmul.f32 %v714, 1.442695
    %v716 = vpow.pop %v715
    %v717 = vadd.f32 %v716, 1.0
    %v718 = vrcp.pop %v717
    %v719 = vmul.f32 %v717, %v718
    %v720 = vsub.f32 1.0, %v719
    %v721 = vmul.f32 %v718, %v720
    %v722 = vadd.f32 %v718, %v721
    %vm723 = vweird.f32 %v717
    %vm724 = vweird.f32 %v718
    %vm725 = vmor %vm723, %vm724
    %v726 = vsel %vm725, %v718, %v722
    %v727 = vand.u32 2147483647, %v717
    %vm728 = vcmp.eq.f32.partialorder %v727, 8.507059e+37
    %v729 = vand.u32 %v717, 2147483648
    %v730 = vor.u32 1.1754944e-38, %v729
    %v731 = vsel %vm728, %v730, %v726
    %v732 = vmul.f32 1.0, %v731
    %v733 = vsub.f32 %v679, %v689
    %v734 = vmul.f32 %v733, %v712
    %v735 = vadd.f32 %v734, %v689
    %v736 = vtanh.pop %v735
    %v737 = vsub.f32 %v736, %v692
    %v738 = vmul.f32 %v737, %v732
    %v739 = vadd.f32 %v738, %v692
    %s740 = scalar_lea.vmem [#allocation12], 32
    %741 = vst [vmem:[%s740] sm:$0xff] %v739
    %s742 = smul.u32 5, 4
    %s743 = smul.addr %s742, 8
    %s744 = scalar_lea.vmem [#allocation3], %s743
    %v745 = vld [vmem:[%s744] sm:$0xff]
    %v746 = vld [vmem:[%s744 + $0x8] sm:$0xff]
    %v747 = vld [vmem:[%s744 + $0x10] sm:$0xff]
    %v748 = vld [vmem:[%s744 + $0x18] sm:$0xff]
    %v749 = vadd.f32 %v746, %v459
    %v750 = vxor.u32 %v749, 2147483648
    %v751 = vmul.f32 %v750, 1.442695
    %v752 = vpow.pop %v751
    %v753 = vadd.f32 %v752, 1.0
    %v754 = vrcp.pop %v753
    %v755 = vmul.f32 %v753, %v754
    %v756 = vsub.f32 1.0, %v755
    %v757 = vmul.f32 %v754, %v756
    %v758 = vadd.f32 %v754, %v757
    %vm759 = vweird.f32 %v753
    %vm760 = vweird.f32 %v754
    %vm761 = vmor %vm759, %vm760
    %v762 = vsel %vm761, %v754, %v758
    %v763 = vand.u32 2147483647, %v753
    %vm764 = vcmp.eq.f32.partialorder %v763, 8.507059e+37
    %v765 = vand.u32 %v753, 2147483648
    %v766 = vor.u32 1.1754944e-38, %v765
    %v767 = vsel %vm764, %v766, %v762
    %v768 = vmul.f32 1.0, %v767
    %v769 = vadd.f32 %v747, %v461
    %v770 = vxor.u32 %v769, 2147483648
    %v771 = vmul.f32 %v770, 1.442695
    %v772 = vpow.pop %v771
    %v773 = vadd.f32 %v772, 1.0
    %v774 = vrcp.pop %v773
    %v775 = vmul.f32 %v773, %v774
    %v776 = vsub.f32 1.0, %v775
    %v777 = vmul.f32 %v774, %v776
    %v778 = vadd.f32 %v774, %v777
    %vm779 = vweird.f32 %v773
    %vm780 = vweird.f32 %v774
    %vm781 = vmor %vm779, %vm780
    %v782 = vsel %vm781, %v774, %v778
    %v783 = vand.u32 2147483647, %v773
    %vm784 = vcmp.eq.f32.partialorder %v783, 8.507059e+37
    %v785 = vand.u32 %v773, 2147483648
    %v786 = vor.u32 1.1754944e-38, %v785
    %v787 = vsel %vm784, %v786, %v782
    %v788 = vmul.f32 1.0, %v787
    %v789 = vsub.f32 %v735, %v745
    %v790 = vmul.f32 %v789, %v768
    %v791 = vadd.f32 %v790, %v745
    %v792 = vtanh.pop %v791
    %v793 = vsub.f32 %v792, %v748
    %v794 = vmul.f32 %v793, %v788
    %v795 = vadd.f32 %v794, %v748
    %s796 = scalar_lea.vmem [#allocation12], 40
    %797 = vst [vmem:[%s796] sm:$0xff] %v795
    %s798 = smul.u32 6, 4
    %s799 = smul.addr %s798, 8
    %s800 = scalar_lea.vmem [#allocation3], %s799
    %v801 = vld [vmem:[%s800] sm:$0xff]
    %v802 = vld [vmem:[%s800 + $0x8] sm:$0xff]
    %v803 = vld [vmem:[%s800 + $0x10] sm:$0xff]
    %v804 = vld [vmem:[%s800 + $0x18] sm:$0xff]
    %v805 = vadd.f32 %v802, %v459
    %v806 = vxor.u32 %v805, 2147483648
    %v807 = vmul.f32 %v806, 1.442695
    %v808 = vpow.pop %v807
    %v809 = vadd.f32 %v808, 1.0
    %v810 = vrcp.pop %v809
    %v811 = vmul.f32 %v809, %v810
    %v812 = vsub.f32 1.0, %v811
    %v813 = vmul.f32 %v810, %v812
    %v814 = vadd.f32 %v810, %v813
    %vm815 = vweird.f32 %v809
    %vm816 = vweird.f32 %v810
    %vm817 = vmor %vm815, %vm816
    %v818 = vsel %vm817, %v810, %v814
    %v819 = vand.u32 2147483647, %v809
    %vm820 = vcmp.eq.f32.partialorder %v819, 8.507059e+37
    %v821 = vand.u32 %v809, 2147483648
    %v822 = vor.u32 1.1754944e-38, %v821
    %v823 = vsel %vm820, %v822, %v818
    %v824 = vmul.f32 1.0, %v823
    %v825 = vadd.f32 %v803, %v461
    %v826 = vxor.u32 %v825, 2147483648
    %v827 = vmul.f32 %v826, 1.442695
    %v828 = vpow.pop %v827
    %v829 = vadd.f32 %v828, 1.0
    %v830 = vrcp.pop %v829
    %v831 = vmul.f32 %v829, %v830
    %v832 = vsub.f32 1.0, %v831
    %v833 = vmul.f32 %v830, %v832
    %v834 = vadd.f32 %v830, %v833
    %vm835 = vweird.f32 %v829
    %vm836 = vweird.f32 %v830
    %vm837 = vmor %vm835, %vm836
    %v838 = vsel %vm837, %v830, %v834
    %v839 = vand.u32 2147483647, %v829
    %vm840 = vcmp.eq.f32.partialorder %v839, 8.507059e+37
    %v841 = vand.u32 %v829, 2147483648
    %v842 = vor.u32 1.1754944e-38, %v841
    %v843 = vsel %vm840, %v842, %v838
    %v844 = vmul.f32 1.0, %v843
    %v845 = vsub.f32 %v791, %v801
    %v846 = vmul.f32 %v845, %v824
    %v847 = vadd.f32 %v846, %v801
    %v848 = vtanh.pop %v847
    %v849 = vsub.f32 %v848, %v804
    %v850 = vmul.f32 %v849, %v844
    %v851 = vadd.f32 %v850, %v804
    %s852 = scalar_lea.vmem [#allocation12], 48
    %853 = vst [vmem:[%s852] sm:$0xff] %v851
    %s854 = smul.u32 7, 4
    %s855 = smul.addr %s854, 8
    %s856 = scalar_lea.vmem [#allocation3], %s855
    %v857 = vld [vmem:[%s856] sm:$0xff]
    %v858 = vld [vmem:[%s856 + $0x8] sm:$0xff]
    %v859 = vld [vmem:[%s856 + $0x10] sm:$0xff]
    %v860 = vld [vmem:[%s856 + $0x18] sm:$0xff]
    %v861 = vadd.f32 %v858, %v459
    %v862 = vxor.u32 %v861, 2147483648
    %v863 = vmul.f32 %v862, 1.442695
    %v864 = vpow.pop %v863
    %v865 = vadd.f32 %v864, 1.0
    %v866 = vrcp.pop %v865
    %v867 = vmul.f32 %v865, %v866
    %v868 = vsub.f32 1.0, %v867
    %v869 = vmul.f32 %v866, %v868
    %v870 = vadd.f32 %v866, %v869
    %vm871 = vweird.f32 %v865
    %vm872 = vweird.f32 %v866
    %vm873 = vmor %vm871, %vm872
    %v874 = vsel %vm873, %v866, %v870
    %v875 = vand.u32 2147483647, %v865
    %vm876 = vcmp.eq.f32.partialorder %v875, 8.507059e+37
    %v877 = vand.u32 %v865, 2147483648
    %v878 = vor.u32 1.1754944e-38, %v877
    %v879 = vsel %vm876, %v878, %v874
    %v880 = vmul.f32 1.0, %v879
    %v881 = vadd.f32 %v859, %v461
    %v882 = vxor.u32 %v881, 2147483648
    %v883 = vmul.f32 %v882, 1.442695
    %v884 = vpow.pop %v883
    %v885 = vadd.f32 %v884, 1.0
    %v886 = vrcp.pop %v885
    %v887 = vmul.f32 %v885, %v886
    %v888 = vsub.f32 1.0, %v887
    %v889 = vmul.f32 %v886, %v888
    %v890 = vadd.f32 %v886, %v889
    %vm891 = vweird.f32 %v885
    %vm892 = vweird.f32 %v886
    %vm893 = vmor %vm891, %vm892
    %v894 = vsel %vm893, %v886, %v890
    %v895 = vand.u32 2147483647, %v885
    %vm896 = vcmp.eq.f32.partialorder %v895, 8.507059e+37
    %v897 = vand.u32 %v885, 2147483648
    %v898 = vor.u32 1.1754944e-38, %v897
    %v899 = vsel %vm896, %v898, %v894
    %v900 = vmul.f32 1.0, %v899
    %v901 = vsub.f32 %v847, %v857
    %v902 = vmul.f32 %v901, %v880
    %v903 = vadd.f32 %v902, %v857
    %v904 = vtanh.pop %v903
    %v905 = vsub.f32 %v904, %v860
    %v906 = vmul.f32 %v905, %v900
    %v907 = vadd.f32 %v906, %v860
    %s908 = scalar_lea.vmem [#allocation12], 56
    %909 = vst [vmem:[%s908] sm:$0xff] %v907
    %910 = vst [vmem:[#allocation2] sm:$0xff] %v903
    // Predicated region
    $region38: #{tpu_custom_call.1} parent=1 // pred_check
      %p911 = pneg %p80
    $region39: #{tpu_custom_call.1} parent=1 // pred_check_branch
      %913 = sbr.rel (%p911) target = $region41
    $region40: #{tpu_custom_call.1} parent=1 // pred_region
      %914 = vst [vmem:[#allocation13] sm:$0xff] %v903
    $region41: #{tpu_custom_call.1} parent=1 // pred_fallthru
      _
    // Predicated region
    $region42: #{tpu_custom_call.1} parent=1 // pred_check
      _
    $region43: #{tpu_custom_call.1} parent=1 // pred_check_branch
      %916 = sbr.rel (0) target = $region45
    $region44: #{tpu_custom_call.1} parent=1 // pred_region
      %918 = vsyncadd [#allocation6], 0
      %s919 = sshll.u32 [#allocation12], 4
      %s920 = int_to_ptr.vmem [resolvable:$true] %s919
      %s921 = sshll.u32 %s4, 4
      %s922 = int_to_ptr.hbm [resolvable:$true] %s921
      %927 = dma.vmem_to_hbm [thread:$0]  %s920, 1024, %s922, [#allocation6], 128, 128, 8
    $region45: #{tpu_custom_call.1} parent=1 // pred_fallthru
      _
    // Predicated region
    $region46: #{tpu_custom_call.1} parent=1 // pred_check
      _
    $region47: #{tpu_custom_call.1} parent=1 // pred_check_branch
      %929 = sbr.rel (0) target = $region49
    $region48: #{tpu_custom_call.1} parent=1 // pred_region
      %931 = vsyncadd [#allocation14], 0
      %s933 = sshll.u32 [#allocation13], 4
      %s934 = int_to_ptr.vmem [resolvable:$true] %s933
      %s935 = sshll.u32 %s5, 4
      %s936 = int_to_ptr.hbm [resolvable:$true] %s935
      %938 = dma.vmem_to_hbm [thread:$0]  %s934, 128, %s936, [#allocation14]
    $region49: #{tpu_custom_call.1} parent=1 // pred_fallthru
      _
    // Predicated region
    $region50: #{tpu_custom_call.1} parent=1 // pred_check
      _
    $region51: #{tpu_custom_call.1} parent=1 // pred_check_branch
      %940 = sbr.rel (0) target = $region53
    $region52: #{tpu_custom_call.1} parent=1 // pred_region
      %942 = dma.done [#allocation6], 1024
    $region53: #{tpu_custom_call.1} parent=1 // pred_fallthru
      _
    // Predicated region
    $region54: #{tpu_custom_call.1} parent=1 // pred_check
      _
    $region55: #{tpu_custom_call.1} parent=1 // pred_check_branch
      %944 = sbr.rel (0) target = $region57
    $region56: #{tpu_custom_call.1} parent=1 // pred_region
      %946 = dma.done [#allocation14], 128
    $region57: #{tpu_custom_call.1} parent=1 // pred_fallthru
      _
    %947 = vsyncpa [#allocation5], 1
    %948 = vsyncpa [#allocation8], 1
    %949 = vsyncpa [#allocation11], 1
    %950 = vsyncpa [#allocation6], 1
    %951 = vsyncpa [#allocation14], 1

</llo_original>
